<compile_context>
chip_gen: v7x
topology: tpu7x:2x2x1
jax: 0.10.0
libtpu: 0.0.40
codegen_flags: <defaults>
</compile_context>

<pallas_src>
import functools

import jax
import jax.numpy as jnp
from jax.experimental import pallas as pl
from jax.experimental.pallas import tpu as pltpu


def _round_up(x, m):
    return (x + m - 1) // m * m


def _physical_vmem_bytes():
    # Generation-aware budget (v5e/v6e: 128 MiB, v7x: 64 MiB per TC).  Fall back
    # to the smallest (v7x) figure if the query is unavailable.
    try:
        return int(pltpu.get_tpu_info().vmem_capacity_bytes)
    except Exception:
        return 64 * 1024 * 1024


def _make_decoder_kernel(n_layers, latent, compute_dtype):
    """refs = (z, c, W0..W{n-1}, b0..b{n-1}, out).

    All feature dims are pre-padded to lane-dense (multiple-of-128) widths and
    weights are pre-cast to compute_dtype in the wrapper.  Biases stay f32 so the
    bias-add / ReLU path is f32 on every generation (v5e has no bf16 VALU).
    """

    def kernel(z_ref, c_ref, *rest):
        w_refs = rest[:n_layers]
        b_refs = rest[n_layers:2 * n_layers]
        o_ref = rest[-1]

        tm, k0 = z_ref.shape

        # Fused idx2onehot + concat + layer-0 matmul: write a 1.0 into lane
        # (latent + label) of the zero-padded z, then a single lane-dense dot
        # against the stacked W0 = [W0_z ; W0_c ; 0].
        labels = c_ref[...]                                    # [tm, 1] int32
        lanes = jax.lax.broadcasted_iota(jnp.int32, (tm, k0), 1)
        onehot = (lanes == labels + latent).astype(compute_dtype)
        h = z_ref[...] + onehot                                # compute_dtype LHS

        for i in range(n_layers):
            h = jnp.dot(h, w_refs[i][...], preferred_element_type=jnp.float32)
            h = h + b_refs[i][...]                             # f32 bias add
            # Every layer uses ReLU (the module's 'sigmoid' module is nn.ReLU()).
            h = jnp.maximum(h, 0.0)
            if i + 1 < n_layers:
                h = h.astype(compute_dtype)

        o_ref[...] = h.astype(o_ref.dtype)

    return kernel


def init_decoder_params(key, layer_sizes, latent_size, num_labels):
    """nn.Linear default init (U[-1/sqrt(in), 1/sqrt(in)]); weights stored [in, out]."""
    input_size = latent_size + num_labels
    in_sizes = [input_size] + list(layer_sizes[:-1])
    out_sizes = list(layer_sizes)
    weights, biases = [], []
    for in_s, out_s in zip(in_sizes, out_sizes):
        key, kw, kb = jax.random.split(key, 3)
        bound = 1.0 / (in_s ** 0.5)
        w = jax.random.uniform(kw, (in_s, out_s), jnp.float32, -bound, bound)
        b = jax.random.uniform(kb, (1, out_s), jnp.float32, -bound, bound)
        weights.append(w)
        biases.append(b)
    return weights, biases


@functools.partial(jax.jit, static_argnames=("num_labels", "compute_dtype",
                                              "block_rows", "out_dtype"))
def decoder_forward(z, c, weights, biases, *, num_labels,
                    compute_dtype=jnp.float32, block_rows=1024, out_dtype=None):
    """z: [B, latent] float, c: [B] int labels -> [B, layer_sizes[-1]]."""
    weights = list(weights)
    biases = list(biases)
    n_layers = len(weights)
    B, latent = z.shape
    out_dims = [int(w.shape[1]) for w in weights]
    out_dim = out_dims[-1]
    out_dtype = z.dtype if out_dtype is None else out_dtype
    out_itemsize = jax.dtypes.canonicalize_dtype(out_dtype).itemsize

    # ---- batch tiling: balanced tiles to minimize padded-batch work ---------
    row_align = 16 if compute_dtype == jnp.bfloat16 else 8
    max_tm = max(row_align, int(block_rows))
    nb = -(-B // max_tm)                          # number of batch tiles
    tm = _round_up(-(-B // nb), row_align)        # balanced, sublane-aligned tile
    B_pad = tm * nb

    # ---- lane-dense feature layout -------------------------------------------
    k0 = latent + num_labels
    k0_pad = _round_up(k0, 128)                   # stacked layer-0 K
    out_pads = [_round_up(d, 128) for d in out_dims]
    in_pads = [k0_pad] + out_pads[:-1]
    out_pad = out_pads[-1]

    # Weights: cast to compute_dtype + zero-pad ONCE outside the kernel.
    w_p = [jnp.pad(w.astype(compute_dtype),
                   ((0, in_pads[i] - w.shape[0]), (0, out_pads[i] - w.shape[1])))
           for i, w in enumerate(weights)]
    # Biases: f32 (f32 bias-add/ReLU on all generations), zero-padded.
    b_p = [jnp.pad(b.astype(jnp.float32), ((0, 0), (0, out_pads[i] - b.shape[1])))
           for i, b in enumerate(biases)]

    # z zero-padded into the stacked-K layout; the one-hot lane is set in-kernel.
    z_p = jnp.pad(z.astype(compute_dtype),
                  ((0, B_pad - B), (0, k0_pad - latent)))
    c_p = jnp.pad(c.reshape(-1).astype(jnp.int32), (0, B_pad - B)).reshape(B_pad, 1)
    # NOTE: labels outside [0, num_labels) silently hit zero-padded weight rows
    # (torch's one-hot path would raise); callers must pass valid labels.

    # ---- specs ---------------------------------------------------------------
    in_specs = [
        pl.BlockSpec((tm, k0_pad), lambda i: (i, 0)),   # z tile (pipelined)
        pl.BlockSpec((tm, 1), lambda i: (i, 0)),        # label tile (pipelined)
    ]
    # Whole-array VMEM residency for parameters: one copy, no per-step DMA and
    # no double buffering.
    in_specs += [pl.BlockSpec(memory_space=pltpu.MemorySpace.VMEM) for _ in w_p]
    in_specs += [pl.BlockSpec(memory_space=pltpu.MemorySpace.VMEM) for _ in b_p]
    out_specs = pl.BlockSpec((tm, out_pad), lambda i: (i, 0))

    # ---- cost estimate + generation-aware VMEM budget -------------------------
    flops = 2 * B_pad * sum(kp * np_ for kp, np_ in zip(in_pads, out_pads))
    param_bytes = sum(int(a.size) * a.dtype.itemsize for a in w_p + b_p)
    io_bytes = (int(z_p.size) * z_p.dtype.itemsize + int(c_p.size) * 4
                + B_pad * out_pad * out_itemsize)
    tile_bytes = 2 * (tm * k0_pad * z_p.dtype.itemsize + tm * 4
                      + tm * out_pad * out_itemsize)
    act_bytes = 4 * tm * max(out_pads) * 4          # headroom for live activations
    need = param_bytes + tile_bytes + act_bytes + (2 << 20)
    # TODO(synk): add a K/N-tiled weight-streaming path when param_bytes alone
    # exceeds the v7x budget (~24-28 MiB); this decoder's parameters are far smaller.
    vmem_limit = int(min(max(need, 32 << 20), int(_physical_vmem_bytes() * 0.9)))

    out_padded = pl.pallas_call(
        _make_decoder_kernel(n_layers, latent, compute_dtype),
        out_shape=jax.ShapeDtypeStruct((B_pad, out_pad), out_dtype),
        grid=(nb,),
        in_specs=in_specs,
        out_specs=out_specs,
        compiler_params=pltpu.CompilerParams(
            # Batch tiles are independent; plain "parallel" kept for portability
            # (CORE_PARALLEL would split tiles across v7x's 2 TCs).
            dimension_semantics=("parallel",),
            vmem_limit_bytes=vmem_limit,
        ),
        cost_estimate=pl.CostEstimate(flops=int(flops), transcendentals=0,
                                      bytes_accessed=int(param_bytes + io_bytes)),
    )(z_p, c_p, *w_p, *b_p)

    return out_padded[:B, :out_dim]


def decoder_reference(z, c, weights, biases, num_labels):
    """Pure-JAX f32 reference mirroring the PyTorch forward."""
    c_onehot = jax.nn.one_hot(c.reshape(-1), num_labels, dtype=z.dtype)
    h = jnp.concatenate([z, c_onehot], axis=-1)
    for w, b in zip(weights, biases):
        h = jnp.maximum(h @ w.astype(z.dtype) + b, 0.0)
    return h


if __name__ == "__main__":
    # Small shapes consistent with the module's forward.
    batch = 2
    latent_size = 16
    num_labels = 4
    layer_sizes = [64, 32]

    key = jax.random.PRNGKey(0)
    k_params, k_z, k_c = jax.random.split(key, 3)

    weights, biases = init_decoder_params(k_params, layer_sizes, latent_size, num_labels)
    z = jax.random.normal(k_z, (batch, latent_size), dtype=jnp.float32)
    c = jax.random.randint(k_c, (batch,), 0, num_labels, dtype=jnp.int32)

    ref = decoder_reference(z, c, weights, biases, num_labels)

    # f32 path (tight vs reference).
    out_f32 = decoder_forward(z, c, tuple(weights), tuple(biases),
                              num_labels=num_labels, compute_dtype=jnp.float32)
    out_f32 = jax.block_until_ready(out_f32)
    assert out_f32.shape == (batch, layer_sizes[-1]), out_f32.shape
    assert jnp.allclose(out_f32, ref, atol=1e-5, rtol=1e-5), "f32 mismatch vs reference"

    # bf16 MXU path (v6e/v7x): weights cast host-side in the wrapper, f32
    # accumulation + f32 bias-add/ReLU (v5e-safe). Looser tolerance vs f32 reference.
    out_bf16 = decoder_forward(z, c, tuple(weights), tuple(biases),
                               num_labels=num_labels, compute_dtype=jnp.bfloat16)
    out_bf16 = jax.block_until_ready(out_bf16)
    assert out_bf16.shape == (batch, layer_sizes[-1]), out_bf16.shape
    assert jnp.allclose(out_bf16.astype(jnp.float32), ref, atol=5e-2, rtol=5e-2), \
        "bf16 mismatch vs reference"

    print("KERNEL_OK")
</pallas_src>

<mosaic_0001>
module attributes {stable_mosaic.version = 11 : i64} {
  func.func @kernel(%arg0: i32, %arg1: memref<8x128xf32, #tpu.memory_space<vmem>>, %arg2: memref<8x1xi32, #tpu.memory_space<vmem>>, %arg3: memref<128x128xf32, #tpu.memory_space<vmem>>, %arg4: memref<128x128xf32, #tpu.memory_space<vmem>>, %arg5: memref<1x128xf32, #tpu.memory_space<vmem>>, %arg6: memref<1x128xf32, #tpu.memory_space<vmem>>, %arg7: memref<8x128xf32, #tpu.memory_space<vmem>>) attributes {dimension_semantics = [#tpu.dimension_semantics<parallel>], iteration_bounds = array<i64: 1>, scalar_prefetch = 0 : i64, scratch_operands = 0 : i64, tpu.core_type = #tpu.core_type<tc>, window_params = [{transform_indices = @transform_0, window_bounds = array<i64: 8, 128>}, {transform_indices = @transform_1, window_bounds = array<i64: 8, 1>}, {pipeline_mode = #tpu.pipeline_mode<synchronous>, transform_indices = @transform_2, window_bounds = array<i64: 128, 128>}, {pipeline_mode = #tpu.pipeline_mode<synchronous>, transform_indices = @transform_3, window_bounds = array<i64: 128, 128>}, {pipeline_mode = #tpu.pipeline_mode<synchronous>, transform_indices = @transform_4, window_bounds = array<i64: 1, 128>}, {pipeline_mode = #tpu.pipeline_mode<synchronous>, transform_indices = @transform_5, window_bounds = array<i64: 1, 128>}, {transform_indices = @transform_6, window_bounds = array<i64: 8, 128>}]} {
    %c0 = arith.constant 0 : index
    %c0_0 = arith.constant 0 : index
    %0 = vector.load %arg2[%c0, %c0_0] : memref<8x1xi32, #tpu.memory_space<vmem>>, vector<8x1xi32>
    %1 = tpu.iota {dimensions = array<i32: 1>} : vector<8x128xi32>
    %c16_i32 = arith.constant 16 : i32
    %2 = vector.broadcast %c16_i32 : i32 to vector<8x1xi32>
    %3 = arith.addi %0, %2 : vector<8x1xi32>
    %4 = vector.broadcast %3 : vector<8x1xi32> to vector<8x128xi32>
    %5 = arith.cmpi eq, %1, %4 : vector<8x128xi32>
    %6 = arith.extui %5 : vector<8x128xi1> to vector<8x128xi32>
    %7 = arith.sitofp %6 : vector<8x128xi32> to vector<8x128xf32>
    %c0_1 = arith.constant 0 : index
    %c0_2 = arith.constant 0 : index
    %8 = vector.load %arg1[%c0_1, %c0_2] : memref<8x128xf32, #tpu.memory_space<vmem>>, vector<8x128xf32>
    %9 = arith.addf %8, %7 : vector<8x128xf32>
    %c0_3 = arith.constant 0 : index
    %c0_4 = arith.constant 0 : index
    %10 = vector.load %arg3[%c0_3, %c0_4] : memref<128x128xf32, #tpu.memory_space<vmem>>, vector<128x128xf32>
    %cst = arith.constant dense<0.000000e+00> : vector<8x128xf32>
    %11 = tpu.matmul %9, %10, %cst {dimension_numbers = #tpu.dot_dimension_numbers<[1], [0], [0], [1], [0, 0, 1, 1], [], []>} : vector<8x128xf32>, vector<128x128xf32>, vector<8x128xf32> -> vector<8x128xf32>
    %c0_5 = arith.constant 0 : index
    %c0_6 = arith.constant 0 : index
    %12 = vector.load %arg5[%c0_5, %c0_6] : memref<1x128xf32, #tpu.memory_space<vmem>>, vector<1x128xf32>
    %13 = vector.broadcast %12 : vector<1x128xf32> to vector<8x128xf32>
    %14 = arith.addf %11, %13 : vector<8x128xf32>
    %cst_7 = arith.constant 0.000000e+00 : f32
    %15 = vector.broadcast %cst_7 : f32 to vector<8x128xf32>
    %16 = arith.maximumf %14, %15 : vector<8x128xf32>
    %c0_8 = arith.constant 0 : index
    %c0_9 = arith.constant 0 : index
    %17 = vector.load %arg4[%c0_8, %c0_9] : memref<128x128xf32, #tpu.memory_space<vmem>>, vector<128x128xf32>
    %cst_10 = arith.constant dense<0.000000e+00> : vector<8x128xf32>
    %18 = tpu.matmul %16, %17, %cst_10 {dimension_numbers = #tpu.dot_dimension_numbers<[1], [0], [0], [1], [0, 0, 1, 1], [], []>} : vector<8x128xf32>, vector<128x128xf32>, vector<8x128xf32> -> vector<8x128xf32>
    %c0_11 = arith.constant 0 : index
    %c0_12 = arith.constant 0 : index
    %19 = vector.load %arg6[%c0_11, %c0_12] : memref<1x128xf32, #tpu.memory_space<vmem>>, vector<1x128xf32>
    %20 = vector.broadcast %19 : vector<1x128xf32> to vector<8x128xf32>
    %21 = arith.addf %18, %20 : vector<8x128xf32>
    %cst_13 = arith.constant 0.000000e+00 : f32
    %22 = vector.broadcast %cst_13 : f32 to vector<8x128xf32>
    %23 = arith.maximumf %21, %22 : vector<8x128xf32>
    %c0_14 = arith.constant 0 : index
    %c0_15 = arith.constant 0 : index
    %24 = vector.load %arg7[%c0_14, %c0_15] : memref<8x128xf32, #tpu.memory_space<vmem>>, vector<8x128xf32>
    tpu.vector_store %arg7[%c0_14, %c0_15], %23 {strides = array<i32>} : memref<8x128xf32, #tpu.memory_space<vmem>>, vector<8x128xf32>,
    return
  }
  func.func @transform_0(%arg0: i32) -> (i32, i32) {
    %c0_i32 = arith.constant 0 : i32
    %c0_i32_0 = arith.constant 0 : i32
    return %arg0, %c0_i32 : i32, i32
  }
  func.func @transform_1(%arg0: i32) -> (i32, i32) {
    %c0_i32 = arith.constant 0 : i32
    %c0_i32_0 = arith.constant 0 : i32
    return %arg0, %c0_i32 : i32, i32
  }
  func.func @transform_2(%arg0: i32) -> (i32, i32) {
    %c0_i32 = arith.constant 0 : i32
    %c0_i32_0 = arith.constant 0 : i32
    %c0_i32_1 = arith.constant 0 : i32
    return %c0_i32, %c0_i32_0 : i32, i32
  }
  func.func @transform_3(%arg0: i32) -> (i32, i32) {
    %c0_i32 = arith.constant 0 : i32
    %c0_i32_0 = arith.constant 0 : i32
    %c0_i32_1 = arith.constant 0 : i32
    return %c0_i32, %c0_i32_0 : i32, i32
  }
  func.func @transform_4(%arg0: i32) -> (i32, i32) {
    %c0_i32 = arith.constant 0 : i32
    %c0_i32_0 = arith.constant 0 : i32
    %c0_i32_1 = arith.constant 0 : i32
    return %c0_i32, %c0_i32_0 : i32, i32
  }
  func.func @transform_5(%arg0: i32) -> (i32, i32) {
    %c0_i32 = arith.constant 0 : i32
    %c0_i32_0 = arith.constant 0 : i32
    %c0_i32_1 = arith.constant 0 : i32
    return %c0_i32, %c0_i32_0 : i32, i32
  }
  func.func @transform_6(%arg0: i32) -> (i32, i32) {
    %c0_i32 = arith.constant 0 : i32
    %c0_i32_0 = arith.constant 0 : i32
    return %arg0, %c0_i32 : i32, i32
  }
}

</mosaic_0001>

<llo_original>
// kernel: decoder_forward.1
$region0: #{decoder_forward.1}
  #allocation0 [shape = 'u32[]', space=smem, size = 0x4, offset = 0x4, fixed_abs, tag = 'smem constant byte address 0x4 - core index']
  #allocation1 [shape = 'u32[144,128]{1,0:T(1,128)}', space=vmem, size = 0x12000, scoped, tag = 'internal scratch']
  %s0 = inlined_call_operand.vmem [shape: f32[8,128], index: 0, kind: input, shape index: {}]
  %s1 = inlined_call_operand.vmem [shape: s32[8,1], index: 1, kind: input, shape index: {}]
  %s2 = inlined_call_operand.vmem [shape: f32[128,128], index: 2, kind: input, shape index: {}]
  %s3 = inlined_call_operand.vmem [shape: f32[128,128], index: 3, kind: input, shape index: {}]
  %s4 = inlined_call_operand.vmem [shape: f32[1,128], index: 4, kind: input, shape index: {}]
  %s5 = inlined_call_operand.vmem [shape: f32[1,128], index: 5, kind: input, shape index: {}]
  %s6 = inlined_call_operand.vmem [shape: f32[8,128], index: 6, kind: output, shape index: {}]
  %s7 = sld [smem:[#allocation0]]
  $region34: #{decoder_forward.1} parent=0
    _
  %s9 = ssub.s32 1, %s7
  %s10 = scalar_select 0, %s9, %s7
  // Predicated region
  $region2: #{decoder_forward.1} parent=0 // pred_check
    _
  $region3: #{decoder_forward.1} parent=0 // pred_check_branch
    %12 = sbr.rel (0) target = $region5
  $region4: #{decoder_forward.1} parent=0 // pred_region
    _
  $region5: #{decoder_forward.1} parent=0 // pred_fallthru
    _
  // Predicated region
  $region6: #{decoder_forward.1} parent=0 // pred_check
    _
  $region7: #{decoder_forward.1} parent=0 // pred_check_branch
    %14 = sbr.rel (0) target = $region9
  $region8: #{decoder_forward.1} parent=0 // pred_region
    _
  $region9: #{decoder_forward.1} parent=0 // pred_fallthru
    _
  // Predicated region
  $region10: #{decoder_forward.1} parent=0 // pred_check
    _
  $region11: #{decoder_forward.1} parent=0 // pred_check_branch
    %16 = sbr.rel (0) target = $region13
  $region12: #{decoder_forward.1} parent=0 // pred_region
    _
  $region13: #{decoder_forward.1} parent=0 // pred_fallthru
    _
  // Predicated region
  $region14: #{decoder_forward.1} parent=0 // pred_check
    _
  $region15: #{decoder_forward.1} parent=0 // pred_check_branch
    %18 = sbr.rel (0) target = $region17
  $region16: #{decoder_forward.1} parent=0 // pred_region
    _
  $region17: #{decoder_forward.1} parent=0 // pred_fallthru
    _
  // Predicated region
  $region18: #{decoder_forward.1} parent=0 // pred_check
    _
  $region19: #{decoder_forward.1} parent=0 // pred_check_branch
    %20 = sbr.rel (0) target = $region21
  $region20: #{decoder_forward.1} parent=0 // pred_region
    _
  $region21: #{decoder_forward.1} parent=0 // pred_fallthru
    _
  // Predicated region
  $region22: #{decoder_forward.1} parent=0 // pred_check
    _
  $region23: #{decoder_forward.1} parent=0 // pred_check_branch
    %22 = sbr.rel (0) target = $region25
  $region24: #{decoder_forward.1} parent=0 // pred_region
    _
  $region25: #{decoder_forward.1} parent=0 // pred_fallthru
    _
  %v23 = vld [vmem:[%s1] sm:$0xff]
  %v24 = vlaneseq
  %v25 = vand.u32 %v24, 127
  %v26 = vadd.s32 %v23, 16
  %27 = vset.pattern.permute.xlu0 0
  %28 = vperm.xlu0 %27, %v26
  %v29 = vpop.permute.xlu0 %28
  %vm30 = vcmp.eq.s32.totalorder %v25, %v29
  %v31 = vsel %vm30, 1, 0
  %v32 = vcvt.s32.f32 %v31
  %v33 = vld [vmem:[%s0] sm:$0xff]
  %v34 = vadd.f32 %v33, %v32
  %v35 = vld [vmem:[%s2] sm:$0xff]
  %v36 = vld [vmem:[%s2 + $0x8] sm:$0xff]
  %v37 = vld [vmem:[%s2 + $0x10] sm:$0xff]
  %v38 = vld [vmem:[%s2 + $0x18] sm:$0xff]
  %v39 = vld [vmem:[%s2 + $0x20] sm:$0xff]
  %v40 = vld [vmem:[%s2 + $0x28] sm:$0xff]
  %v41 = vld [vmem:[%s2 + $0x30] sm:$0xff]
  %v42 = vld [vmem:[%s2 + $0x38] sm:$0xff]
  %v43 = vld [vmem:[%s2 + $0x40] sm:$0xff]
  %v44 = vld [vmem:[%s2 + $0x48] sm:$0xff]
  %v45 = vld [vmem:[%s2 + $0x50] sm:$0xff]
  %v46 = vld [vmem:[%s2 + $0x58] sm:$0xff]
  %v47 = vld [vmem:[%s2 + $0x60] sm:$0xff]
  %v48 = vld [vmem:[%s2 + $0x68] sm:$0xff]
  %v49 = vld [vmem:[%s2 + $0x70] sm:$0xff]
  %v50 = vld [vmem:[%s2 + $0x78] sm:$0xff]
  %v51 = vld [vmem:[%s4] sm:$0x1]
  %v53 = vlaneseq
  %v54 = vshrl.u32 %v53, 7
  %v55 = vsub.s32 0, %v54
  %v56 = vrot.slane %v51, %v55
  %58 = vmatprep.subr.mxu0 0.0
  %59 = vmatpush1.msra.mxu0 %v35
  %60 = vmatprep.subr.mxu0 0.0
  %61 = vmatpush1.msra.mxu0 %v36
  %62 = vmatprep.subr.mxu0 0.0
  %63 = vmatpush1.msra.mxu0 %v37
  %64 = vmatprep.subr.mxu0 0.0
  %65 = vmatpush1.msra.mxu0 %v38
  %66 = vmatprep.subr.mxu0 0.0
  %67 = vmatpush1.msra.mxu0 %v39
  %68 = vmatprep.subr.mxu0 0.0
  %69 = vmatpush1.msra.mxu0 %v40
  %70 = vmatprep.subr.mxu0 0.0
  %71 = vmatpush1.msra.mxu0 %v41
  %72 = vmatprep.subr.mxu0 0.0
  %73 = vmatpush1.msra.mxu0 %v42
  %74 = vmatprep.subr.mxu0 0.0
  %75 = vmatpush1.msra.mxu0 %v43
  %76 = vmatprep.subr.mxu0 0.0
  %77 = vmatpush1.msra.mxu0 %v44
  %78 = vmatprep.subr.mxu0 0.0
  %79 = vmatpush1.msra.mxu0 %v45
  %80 = vmatprep.subr.mxu0 0.0
  %81 = vmatpush1.msra.mxu0 %v46
  %82 = vmatprep.subr.mxu0 0.0
  %83 = vmatpush1.msra.mxu0 %v47
  %84 = vmatprep.subr.mxu0 0.0
  %85 = vmatpush1.msra.mxu0 %v48
  %86 = vmatprep.subr.mxu0 0.0
  %87 = vmatpush1.msra.mxu0 %v49
  %88 = vmatprep.subr.mxu0 0.0
  %89 = vmatpush1.msra.mxu0 %v50
  %90 = vmatprep.subr.mxu0 0.0
  %91 = vmatpush1.msra.mxu0 0.0
  %92 = vmatprep.subr.mxu0 0.0
  %93 = vmatpush1.msra.mxu0 0.0
  %94 = vmatprep.subr.mxu0 0.0
  %95 = vmatpush1.msra.mxu0 0.0
  %96 = vmatprep.subr.mxu0 0.0
  %97 = vmatpush1.msra.mxu0 0.0
  %98 = vmatprep.subr.mxu0 0.0
  %99 = vmatpush1.msra.mxu0 0.0
  %100 = vmatprep.subr.mxu0 0.0
  %101 = vmatpush1.msra.mxu0 0.0
  %102 = vmatprep.subr.mxu0 0.0
  %103 = vmatpush1.msra.mxu0 0.0
  %104 = vmatprep.subr.mxu0 0.0
  %105 = vmatpush1.msra.mxu0 0.0
  %106 = vmatprep.subr.mxu0 0.0
  %107 = vmatpush1.msra.mxu0 0.0
  %108 = vmatprep.subr.mxu0 0.0
  %109 = vmatpush1.msra.mxu0 0.0
  %110 = vmatprep.subr.mxu0 0.0
  %111 = vmatpush1.msra.mxu0 0.0
  %112 = vmatprep.subr.mxu0 0.0
  %113 = vmatpush1.msra.mxu0 0.0
  %114 = vmatprep.subr.mxu0 0.0
  %115 = vmatpush1.msra.mxu0 0.0
  %116 = vmatprep.subr.mxu0 0.0
  %117 = vmatpush1.msra.mxu0 0.0
  %118 = vmatprep.subr.mxu0 0.0
  %119 = vmatpush1.msra.mxu0 0.0
  %120 = vmatprep.subr.mxu0 0.0
  %121 = vmatpush1.msra.mxu0 0.0
  %122 = vmatprep.mubr.f32.mxu0 0.0
  %123 = vmatmul.mubr.f32.gmra.mrb[0].mxu0 %v34
  %v124 = vpop.f32.mrb[0].mxu0
  %v125 = vadd.f32 %v56, %v124
  %v126 = vpop.f32.mrb[0].mxu0
  %127 = vdwg.mxu0
  %v128 = vmax.f32 %v125, 0.0
  %v129 = vld [vmem:[%s3] sm:$0xff]
  %v130 = vld [vmem:[%s3 + $0x8] sm:$0xff]
  %v131 = vld [vmem:[%s3 + $0x10] sm:$0xff]
  %v132 = vld [vmem:[%s3 + $0x18] sm:$0xff]
  %v133 = vld [vmem:[%s3 + $0x20] sm:$0xff]
  %v134 = vld [vmem:[%s3 + $0x28] sm:$0xff]
  %v135 = vld [vmem:[%s3 + $0x30] sm:$0xff]
  %v136 = vld [vmem:[%s3 + $0x38] sm:$0xff]
  %v137 = vld [vmem:[%s3 + $0x40] sm:$0xff]
  %v138 = vld [vmem:[%s3 + $0x48] sm:$0xff]
  %v139 = vld [vmem:[%s3 + $0x50] sm:$0xff]
  %v140 = vld [vmem:[%s3 + $0x58] sm:$0xff]
  %v141 = vld [vmem:[%s3 + $0x60] sm:$0xff]
  %v142 = vld [vmem:[%s3 + $0x68] sm:$0xff]
  %v143 = vld [vmem:[%s3 + $0x70] sm:$0xff]
  %v144 = vld [vmem:[%s3 + $0x78] sm:$0xff]
  %v145 = vld [vmem:[%s5] sm:$0x1]
  %v147 = vlaneseq
  %v148 = vshrl.u32 %v147, 7
  %v149 = vsub.s32 0, %v148
  %v150 = vrot.slane %v145, %v149
  %152 = vmatprep.subr.mxu0 0.0
  %153 = vmatpush1.msra.mxu0 %v129
  %154 = vmatprep.subr.mxu0 0.0
  %155 = vmatpush1.msra.mxu0 %v130
  %156 = vmatprep.subr.mxu0 0.0
  %157 = vmatpush1.msra.mxu0 %v131
  %158 = vmatprep.subr.mxu0 0.0
  %159 = vmatpush1.msra.mxu0 %v132
  %160 = vmatprep.subr.mxu0 0.0
  %161 = vmatpush1.msra.mxu0 %v133
  %162 = vmatprep.subr.mxu0 0.0
  %163 = vmatpush1.msra.mxu0 %v134
  %164 = vmatprep.subr.mxu0 0.0
  %165 = vmatpush1.msra.mxu0 %v135
  %166 = vmatprep.subr.mxu0 0.0
  %167 = vmatpush1.msra.mxu0 %v136
  %168 = vmatprep.subr.mxu0 0.0
  %169 = vmatpush1.msra.mxu0 %v137
  %170 = vmatprep.subr.mxu0 0.0
  %171 = vmatpush1.msra.mxu0 %v138
  %172 = vmatprep.subr.mxu0 0.0
  %173 = vmatpush1.msra.mxu0 %v139
  %174 = vmatprep.subr.mxu0 0.0
  %175 = vmatpush1.msra.mxu0 %v140
  %176 = vmatprep.subr.mxu0 0.0
  %177 = vmatpush1.msra.mxu0 %v141
  %178 = vmatprep.subr.mxu0 0.0
  %179 = vmatpush1.msra.mxu0 %v142
  %180 = vmatprep.subr.mxu0 0.0
  %181 = vmatpush1.msra.mxu0 %v143
  %182 = vmatprep.subr.mxu0 0.0
  %183 = vmatpush1.msra.mxu0 %v144
  %184 = vmatprep.subr.mxu0 0.0
  %185 = vmatpush1.msra.mxu0 0.0
  %186 = vmatprep.subr.mxu0 0.0
  %187 = vmatpush1.msra.mxu0 0.0
  %188 = vmatprep.subr.mxu0 0.0
  %189 = vmatpush1.msra.mxu0 0.0
  %190 = vmatprep.subr.mxu0 0.0
  %191 = vmatpush1.msra.mxu0 0.0
  %192 = vmatprep.subr.mxu0 0.0
  %193 = vmatpush1.msra.mxu0 0.0
  %194 = vmatprep.subr.mxu0 0.0
  %195 = vmatpush1.msra.mxu0 0.0
  %196 = vmatprep.subr.mxu0 0.0
  %197 = vmatpush1.msra.mxu0 0.0
  %198 = vmatprep.subr.mxu0 0.0
  %199 = vmatpush1.msra.mxu0 0.0
  %200 = vmatprep.subr.mxu0 0.0
  %201 = vmatpush1.msra.mxu0 0.0
  %202 = vmatprep.subr.mxu0 0.0
  %203 = vmatpush1.msra.mxu0 0.0
  %204 = vmatprep.subr.mxu0 0.0
  %205 = vmatpush1.msra.mxu0 0.0
  %206 = vmatprep.subr.mxu0 0.0
  %207 = vmatpush1.msra.mxu0 0.0
  %208 = vmatprep.subr.mxu0 0.0
  %209 = vmatpush1.msra.mxu0 0.0
  %210 = vmatprep.subr.mxu0 0.0
  %211 = vmatpush1.msra.mxu0 0.0
  %212 = vmatprep.subr.mxu0 0.0
  %213 = vmatpush1.msra.mxu0 0.0
  %214 = vmatprep.subr.mxu0 0.0
  %215 = vmatpush1.msra.mxu0 0.0
  %216 = vmatprep.mubr.f32.mxu0 0.0
  %217 = vmatmul.mubr.f32.gmra.mrb[0].mxu0 %v128
  %v218 = vpop.f32.mrb[0].mxu0
  %v219 = vadd.f32 %v150, %v218
  %v220 = vpop.f32.mrb[0].mxu0
  %221 = vdwg.mxu0
  %v222 = vmax.f32 %v219, 0.0
  %223 = vst [vmem:[%s6] sm:$0xff] %v222
  // Predicated region
  $region26: #{decoder_forward.1} parent=0 // pred_check
    _
  $region27: #{decoder_forward.1} parent=0 // pred_check_branch
    %225 = sbr.rel (0) target = $region29
  $region28: #{decoder_forward.1} parent=0 // pred_region
    _
  $region29: #{decoder_forward.1} parent=0 // pred_fallthru
    _
  // Predicated region
  $region30: #{decoder_forward.1} parent=0 // pred_check
    _
  $region31: #{decoder_forward.1} parent=0 // pred_check_branch
    %227 = sbr.rel (0) target = $region33
  $region32: #{decoder_forward.1} parent=0 // pred_region
    _
  $region33: #{decoder_forward.1} parent=0 // pred_fallthru
    _

</llo_original>
